<compile_context>
chip_gen: v5e
topology: v5e:2x2
jax: 0.10.0
libtpu: 0.0.40
codegen_flags: <defaults>
</compile_context>

<pallas_src>
import functools

import numpy as np
import jax
import jax.numpy as jnp
from jax.experimental import pallas as pl
from jax.experimental.pallas import tpu as pltpu

EPS = 1e-5          # InstanceNorm2d default
NEG_SLOPE = 0.01    # LeakyReLU default


def _round_up(n, m):
    return (n + m - 1) // m * m


# ---------------------------------------------------------------------------
# In-kernel helpers
# ---------------------------------------------------------------------------
def _instnorm_lrelu(y, spb, HW):
    """Per-sample InstanceNorm (biased var, one-pass) + LeakyReLU.

    y: (Cout_p, spb*HW) f32.  Padded channel rows are all-zero and stay zero.
    """
    inv_hw = 1.0 / HW
    if spb == 1:
        mu = jnp.sum(y, axis=1, keepdims=True) * inv_hw
        ex2 = jnp.sum(y * y, axis=1, keepdims=True) * inv_hw
        var = jnp.maximum(ex2 - mu * mu, 0.0)      # clamp cancellation
        yn = (y - mu) * jax.lax.rsqrt(var + EPS)
    else:
        cout = y.shape[0]
        y3 = y.reshape(cout, spb, HW)              # per-sample stats
        mu = jnp.sum(y3, axis=2, keepdims=True) * inv_hw
        ex2 = jnp.sum(y3 * y3, axis=2, keepdims=True) * inv_hw
        var = jnp.maximum(ex2 - mu * mu, 0.0)
        yn = ((y3 - mu) * jax.lax.rsqrt(var + EPS)).reshape(cout, spb * HW)
    return jnp.where(yn >= 0, yn, NEG_SLOPE * yn)


def _stage(x, w, masks, W, L, spb, HW):
    """3x3 'same' conv as ONE stacked-tap matmul, then IN + LReLU.

    x     : (Cin_p, L) f32  (L = spb*HW, lane axis = sample-major flattened h*W+w)
    w     : (Cout_p, 9*Cin_p) bf16, column index = (kh*3+kw)*Cin_p + cin
    masks : (9, L) f32, 1.0 where tap (kh,kw) reads a real pixel of the SAME
            sample, 0.0 in the zero padding (also kills roll wrap-around).
    """
    taps = []
    for kh in range(3):
        for kw in range(3):
            t = kh * 3 + kw
            off = (kh - 1) * W + (kw - 1)          # flattened tap offset
            shifted = x if off == 0 else pltpu.roll(x, (-off) % L, axis=1)
            if kh == 1 and kw == 1:                # center tap: mask all ones
                taps.append(shifted)
            else:
                taps.append(shifted * masks[t:t + 1, :])
    # Sublane-aligned concat (each operand is Cin_p = multiple of 8 f32 rows),
    # single bf16 cast, single K=9*Cin_p MXU matmul with f32 accumulation.
    tap_mat = jnp.concatenate(taps, axis=0).astype(jnp.bfloat16)   # (9*Cin_p, L)
    y = jnp.dot(w, tap_mat, preferred_element_type=jnp.float32)    # (Cout_p, L)
    return _instnorm_lrelu(y, spb, HW)


def _resblock_kernel(x_ref, w2_ref, w1_ref, mask_ref, out_ref, *, H, W, spb):
    """One grid block = `spb` samples folded into the lane axis."""
    HW = H * W
    L = spb * HW
    xf = x_ref[...]                                # (C1p, L) f32
    masks = mask_ref[...]                          # (9, L)  f32 (loaded once)
    y1 = _stage(xf, w2_ref[...], masks, W, L, spb, HW)   # conv2 -> IN -> LReLU
    y2 = _stage(y1, w1_ref[...], masks, W, L, spb, HW)   # conv1 -> IN -> LReLU
    out_ref[...] = xf + y2                         # residual add


# ---------------------------------------------------------------------------
# Host-side (trace-time) constant prep
# ---------------------------------------------------------------------------
def _pack_weights(w, cin_p, cout_p):
    """(Cout, Cin, 3, 3) -> dense (Cout_p, 9*Cin_p) bf16 slab.

    Column index = (kh*3+kw)*Cin_p + cin, matching the in-kernel tap stacking.
    Padded rows/columns are zero.
    """
    cout, cin, kh, kw = w.shape
    wt = jnp.transpose(w, (0, 2, 3, 1)).reshape(cout, kh * kw, cin)  # (Cout,9,Cin)
    wp = jnp.zeros((cout_p, kh * kw, cin_p), w.dtype).at[:cout, :, :cin].set(wt)
    return wp.reshape(cout_p, kh * kw * cin_p).astype(jnp.bfloat16)


def _tap_masks(H, W, spb):
    """(9, spb*H*W) f32 validity of each 3x3 tap, tiled per folded sample."""
    r = np.arange(H * W) // W
    c = np.arange(H * W) % W
    m = np.zeros((9, H * W), np.float32)
    for kh in range(3):
        for kw in range(3):
            dh, dw = kh - 1, kw - 1
            ok = (r + dh >= 0) & (r + dh < H) & (c + dw >= 0) & (c + dw < W)
            m[kh * 3 + kw] = ok
    return jnp.asarray(np.tile(m, (1, spb)))


# ---------------------------------------------------------------------------
# resblock forward (single fused pallas_call)
# ---------------------------------------------------------------------------
@jax.jit
def resblock_forward(x, w_conv1, w_conv2):
    """x: (N, C1, H, W) f32.  forward(x) = x + conv1(conv2(x))."""
    N, C1, H, W = x.shape
    HW = H * W
    C2 = w_conv2.shape[0]              # conv2: C1 -> C2, conv1: C2 -> C1
    C1p = _round_up(C1, 8)             # pad channels -> sublane-tile aligned
    C2p = _round_up(C2, 8)

    # Keep >=2 "parallel" grid blocks whenever possible (v7x: 2 TCs/chip);
    # fold the remaining batch into the lane axis (v5e/v6e: fewer grid steps,
    # more MXU lane fill).
    num_blocks = 2 if (N >= 2 and N % 2 == 0) else N
    spb = N // num_blocks
    L = spb * HW

    # Zero-pad channels, fold spb samples into the lane axis.
    xp = jnp.pad(x, ((0, 0), (0, C1p - C1), (0, 0), (0, 0)))
    xf = (xp.reshape(num_blocks, spb, C1p, HW)
            .transpose(0, 2, 1, 3)
            .reshape(num_blocks, C1p, L))

    w2p = _pack_weights(w_conv2, C1p, C2p)   # (C2p, 9*C1p) bf16
    w1p = _pack_weights(w_conv1, C2p, C1p)   # (C1p, 9*C2p) bf16
    masks = _tap_masks(H, W, spb)            # (9, L) f32

    kernel = functools.partial(_resblock_kernel, H=H, W=W, spb=spb)

    out = pl.pallas_call(
        kernel,
        out_shape=jax.ShapeDtypeStruct((num_blocks, C1p, L), jnp.float32),
        grid=(num_blocks,),
        in_specs=[
            # per-block x; leading dim squeezed -> kernel sees (C1p, L)
            pl.BlockSpec((pl.Squeezed(), C1p, L), lambda b: (b, 0, 0)),
            # grid-invariant dense slabs (constant index_map -> fetched once)
            pl.BlockSpec((C2p, 9 * C1p), lambda b: (0, 0)),
            pl.BlockSpec((C1p, 9 * C2p), lambda b: (0, 0)),
            pl.BlockSpec((9, L), lambda b: (0, 0)),
        ],
        out_specs=pl.BlockSpec((pl.Squeezed(), C1p, L), lambda b: (b, 0, 0)),
        compiler_params=pltpu.CompilerParams(
            # independent blocks -> shard across TensorCores on v7x
            dimension_semantics=("parallel",)),
        # NOTE: at production CycleGAN shapes (C=128..256, H=W=64+) the lane
        # axis must be halo-tiled and vmem_limit_bytes set for v7x's 64 MiB.
    )(xf, w2p, w1p, masks)

    # Unfold lanes -> samples, drop padded channels.
    out = (out.reshape(num_blocks, C1p, spb, HW)
              .transpose(0, 2, 1, 3)
              .reshape(N, C1p, H, W))
    return out[:, :C1]


# ---------------------------------------------------------------------------
# Pure-JAX f32 reference (verification only)
# ---------------------------------------------------------------------------
def _ref_conv_in_lrelu(x, w):
    y = jax.lax.conv_general_dilated(
        x, w, window_strides=(1, 1), padding=((1, 1), (1, 1)),
        dimension_numbers=("NCHW", "OIHW", "NCHW"),
        precision=jax.lax.Precision.HIGHEST)
    mu = jnp.mean(y, axis=(2, 3), keepdims=True)
    var = jnp.mean(jnp.square(y - mu), axis=(2, 3), keepdims=True)
    y = (y - mu) * jax.lax.rsqrt(var + EPS)
    return jnp.where(y >= 0, y, NEG_SLOPE * y)


def resblock_reference(x, w_conv1, w_conv2):
    return x + _ref_conv_in_lrelu(_ref_conv_in_lrelu(x, w_conv2), w_conv1)


# ---------------------------------------------------------------------------
if __name__ == "__main__":
    # Module config: resblock(fn=4, ks=3, shrink=1)
    N, C, H, W = 2, 4, 16, 16
    KS = 3

    key = jax.random.PRNGKey(0)
    kx, k1, k2 = jax.random.split(key, 3)

    x = jax.random.normal(kx, (N, C, H, W), dtype=jnp.float32)

    # Conv2d-style (kaiming-uniform-ish) init, bias=False.
    bound = 1.0 / (C * KS * KS) ** 0.5
    w_conv1 = jax.random.uniform(k1, (C, C, KS, KS), jnp.float32, -bound, bound)
    w_conv2 = jax.random.uniform(k2, (C, C, KS, KS), jnp.float32, -bound, bound)

    out = jax.block_until_ready(resblock_forward(x, w_conv1, w_conv2))
    assert out.shape == (N, C, H, W)

    ref = resblock_reference(x, w_conv1, w_conv2)
    # Kernel uses bf16 MXU operands (single cast of the stacked tap matrix)
    # vs. an f32 HIGHEST-precision reference; InstanceNorm re-normalizes, so
    # the observed error is O(1e-3) and 2e-2 leaves a wide margin.
    max_err = float(jnp.max(jnp.abs(out - ref)))
    assert jnp.allclose(out, ref, rtol=2e-2, atol=2e-2), max_err

    print("KERNEL_OK")
</pallas_src>

<mosaic_0001>
module attributes {stable_mosaic.version = 11 : i64} {
  func.func @_resblock_kernel(%arg0: i32, %arg1: memref<1x8x256xf32, #tpu.memory_space<vmem>>, %arg2: memref<8x72xbf16, #tpu.memory_space<vmem>>, %arg3: memref<8x72xbf16, #tpu.memory_space<vmem>>, %arg4: memref<9x256xf32, #tpu.memory_space<vmem>>, %arg5: memref<1x8x256xf32, #tpu.memory_space<vmem>>) attributes {dimension_semantics = [#tpu.dimension_semantics<parallel>], iteration_bounds = array<i64: 2>, scalar_prefetch = 0 : i64, scratch_operands = 0 : i64, tpu.core_type = #tpu.core_type<tc>, window_params = [{transform_indices = @transform_0, window_bounds = array<i64: 1, 8, 256>}, {pipeline_mode = #tpu.pipeline_mode<synchronous>, transform_indices = @transform_1, window_bounds = array<i64: 8, 72>}, {pipeline_mode = #tpu.pipeline_mode<synchronous>, transform_indices = @transform_2, window_bounds = array<i64: 8, 72>}, {pipeline_mode = #tpu.pipeline_mode<synchronous>, transform_indices = @transform_3, window_bounds = array<i64: 9, 256>}, {transform_indices = @transform_4, window_bounds = array<i64: 1, 8, 256>}]} {
    %c0 = arith.constant 0 : index
    %c0_0 = arith.constant 0 : index
    %c0_1 = arith.constant 0 : index
    %0 = vector.load %arg1[%c0, %c0_0, %c0_1] : memref<1x8x256xf32, #tpu.memory_space<vmem>>, vector<1x8x256xf32>
    %1 = vector.shape_cast %0 : vector<1x8x256xf32> to vector<8x256xf32>
    %c0_2 = arith.constant 0 : index
    %c0_3 = arith.constant 0 : index
    %2 = vector.load %arg4[%c0_2, %c0_3] : memref<9x256xf32, #tpu.memory_space<vmem>>, vector<9x256xf32>
    %c0_4 = arith.constant 0 : index
    %c0_5 = arith.constant 0 : index
    %3 = vector.load %arg2[%c0_4, %c0_5] : memref<8x72xbf16, #tpu.memory_space<vmem>>, vector<8x72xbf16>
    %c17_i32 = arith.constant 17 : i32
    %4 = tpu.dynamic_rotate %1 by %c17_i32 dim 1 : vector<8x256xf32>, i32 -> vector<8x256xf32>
    %5 = vector.extract_strided_slice %2 {offsets = [0, 0], sizes = [1, 256], strides = [1, 1]} : vector<9x256xf32> to vector<1x256xf32>
    %6 = vector.broadcast %5 : vector<1x256xf32> to vector<8x256xf32>
    %7 = arith.mulf %4, %6 : vector<8x256xf32>
    %c16_i32 = arith.constant 16 : i32
    %8 = tpu.dynamic_rotate %1 by %c16_i32 dim 1 : vector<8x256xf32>, i32 -> vector<8x256xf32>
    %9 = vector.extract_strided_slice %2 {offsets = [1, 0], sizes = [1, 256], strides = [1, 1]} : vector<9x256xf32> to vector<1x256xf32>
    %10 = vector.broadcast %9 : vector<1x256xf32> to vector<8x256xf32>
    %11 = arith.mulf %8, %10 : vector<8x256xf32>
    %c15_i32 = arith.constant 15 : i32
    %12 = tpu.dynamic_rotate %1 by %c15_i32 dim 1 : vector<8x256xf32>, i32 -> vector<8x256xf32>
    %13 = vector.extract_strided_slice %2 {offsets = [2, 0], sizes = [1, 256], strides = [1, 1]} : vector<9x256xf32> to vector<1x256xf32>
    %14 = vector.broadcast %13 : vector<1x256xf32> to vector<8x256xf32>
    %15 = arith.mulf %12, %14 : vector<8x256xf32>
    %c1_i32 = arith.constant 1 : i32
    %16 = tpu.dynamic_rotate %1 by %c1_i32 dim 1 : vector<8x256xf32>, i32 -> vector<8x256xf32>
    %17 = vector.extract_strided_slice %2 {offsets = [3, 0], sizes = [1, 256], strides = [1, 1]} : vector<9x256xf32> to vector<1x256xf32>
    %18 = vector.broadcast %17 : vector<1x256xf32> to vector<8x256xf32>
    %19 = arith.mulf %16, %18 : vector<8x256xf32>
    %c255_i32 = arith.constant 255 : i32
    %20 = tpu.dynamic_rotate %1 by %c255_i32 dim 1 : vector<8x256xf32>, i32 -> vector<8x256xf32>
    %21 = vector.extract_strided_slice %2 {offsets = [5, 0], sizes = [1, 256], strides = [1, 1]} : vector<9x256xf32> to vector<1x256xf32>
    %22 = vector.broadcast %21 : vector<1x256xf32> to vector<8x256xf32>
    %23 = arith.mulf %20, %22 : vector<8x256xf32>
    %c241_i32 = arith.constant 241 : i32
    %24 = tpu.dynamic_rotate %1 by %c241_i32 dim 1 : vector<8x256xf32>, i32 -> vector<8x256xf32>
    %25 = vector.extract_strided_slice %2 {offsets = [6, 0], sizes = [1, 256], strides = [1, 1]} : vector<9x256xf32> to vector<1x256xf32>
    %26 = vector.broadcast %25 : vector<1x256xf32> to vector<8x256xf32>
    %27 = arith.mulf %24, %26 : vector<8x256xf32>
    %c240_i32 = arith.constant 240 : i32
    %28 = tpu.dynamic_rotate %1 by %c240_i32 dim 1 : vector<8x256xf32>, i32 -> vector<8x256xf32>
    %29 = vector.extract_strided_slice %2 {offsets = [7, 0], sizes = [1, 256], strides = [1, 1]} : vector<9x256xf32> to vector<1x256xf32>
    %30 = vector.broadcast %29 : vector<1x256xf32> to vector<8x256xf32>
    %31 = arith.mulf %28, %30 : vector<8x256xf32>
    %c239_i32 = arith.constant 239 : i32
    %32 = tpu.dynamic_rotate %1 by %c239_i32 dim 1 : vector<8x256xf32>, i32 -> vector<8x256xf32>
    %33 = vector.extract_strided_slice %2 {offsets = [8, 0], sizes = [1, 256], strides = [1, 1]} : vector<9x256xf32> to vector<1x256xf32>
    %34 = vector.broadcast %33 : vector<1x256xf32> to vector<8x256xf32>
    %35 = arith.mulf %32, %34 : vector<8x256xf32>
    %36 = tpu.concatenate %7, %11, %15, %19, %1, %23, %27, %31, %35 in 0 : vector<8x256xf32>, vector<8x256xf32>, vector<8x256xf32>, vector<8x256xf32>, vector<8x256xf32>, vector<8x256xf32>, vector<8x256xf32>, vector<8x256xf32>, vector<8x256xf32> -> vector<72x256xf32>
    %37 = arith.truncf %36 : vector<72x256xf32> to vector<72x256xbf16>
    %cst = arith.constant dense<0.000000e+00> : vector<8x256xf32>
    %38 = tpu.matmul %3, %37, %cst {dimension_numbers = #tpu.dot_dimension_numbers<[1], [0], [0], [1], [0, 0, 1, 1], [], []>} : vector<8x72xbf16>, vector<72x256xbf16>, vector<8x256xf32> -> vector<8x256xf32>
    %cst_6 = arith.constant dense<0.000000e+00> : vector<8xf32>
    %39 = vector.multi_reduction <add>, %38, %cst_6 [1] : vector<8x256xf32> to vector<8xf32>
    %40 = vector.shape_cast %39 : vector<8xf32> to vector<8x1xf32>
    %cst_7 = arith.constant 3.906250e-03 : f32
    %41 = vector.broadcast %cst_7 : f32 to vector<8x1xf32>
    %42 = arith.mulf %40, %41 : vector<8x1xf32>
    %43 = arith.mulf %38, %38 : vector<8x256xf32>
    %cst_8 = arith.constant dense<0.000000e+00> : vector<8xf32>
    %44 = vector.multi_reduction <add>, %43, %cst_8 [1] : vector<8x256xf32> to vector<8xf32>
    %45 = vector.shape_cast %44 : vector<8xf32> to vector<8x1xf32>
    %cst_9 = arith.constant 3.906250e-03 : f32
    %46 = vector.broadcast %cst_9 : f32 to vector<8x1xf32>
    %47 = arith.mulf %45, %46 : vector<8x1xf32>
    %48 = arith.mulf %42, %42 : vector<8x1xf32>
    %49 = arith.subf %47, %48 : vector<8x1xf32>
    %cst_10 = arith.constant 0.000000e+00 : f32
    %50 = vector.broadcast %cst_10 : f32 to vector<8x1xf32>
    %51 = arith.maximumf %49, %50 : vector<8x1xf32>
    %52 = vector.broadcast %42 : vector<8x1xf32> to vector<8x256xf32>
    %53 = arith.subf %38, %52 : vector<8x256xf32>
    %cst_11 = arith.constant 9.99999974E-6 : f32
    %54 = vector.broadcast %cst_11 : f32 to vector<8x1xf32>
    %55 = arith.addf %51, %54 : vector<8x1xf32>
    %56 = math.rsqrt %55 : vector<8x1xf32>
    %57 = vector.broadcast %56 : vector<8x1xf32> to vector<8x256xf32>
    %58 = arith.mulf %53, %57 : vector<8x256xf32>
    %cst_12 = arith.constant 0.000000e+00 : f32
    %59 = vector.broadcast %cst_12 : f32 to vector<8x256xf32>
    %60 = arith.cmpf oge, %58, %59 : vector<8x256xf32>
    %cst_13 = arith.constant 0.00999999977 : f32
    %61 = vector.broadcast %cst_13 : f32 to vector<8x256xf32>
    %62 = arith.mulf %61, %58 : vector<8x256xf32>
    %63 = arith.select %60, %58, %62 : vector<8x256xi1>, vector<8x256xf32>
    %c0_14 = arith.constant 0 : index
    %c0_15 = arith.constant 0 : index
    %64 = vector.load %arg3[%c0_14, %c0_15] : memref<8x72xbf16, #tpu.memory_space<vmem>>, vector<8x72xbf16>
    %c17_i32_16 = arith.constant 17 : i32
    %65 = tpu.dynamic_rotate %63 by %c17_i32_16 dim 1 : vector<8x256xf32>, i32 -> vector<8x256xf32>
    %66 = vector.extract_strided_slice %2 {offsets = [0, 0], sizes = [1, 256], strides = [1, 1]} : vector<9x256xf32> to vector<1x256xf32>
    %67 = vector.broadcast %66 : vector<1x256xf32> to vector<8x256xf32>
    %68 = arith.mulf %65, %67 : vector<8x256xf32>
    %c16_i32_17 = arith.constant 16 : i32
    %69 = tpu.dynamic_rotate %63 by %c16_i32_17 dim 1 : vector<8x256xf32>, i32 -> vector<8x256xf32>
    %70 = vector.extract_strided_slice %2 {offsets = [1, 0], sizes = [1, 256], strides = [1, 1]} : vector<9x256xf32> to vector<1x256xf32>
    %71 = vector.broadcast %70 : vector<1x256xf32> to vector<8x256xf32>
    %72 = arith.mulf %69, %71 : vector<8x256xf32>
    %c15_i32_18 = arith.constant 15 : i32
    %73 = tpu.dynamic_rotate %63 by %c15_i32_18 dim 1 : vector<8x256xf32>, i32 -> vector<8x256xf32>
    %74 = vector.extract_strided_slice %2 {offsets = [2, 0], sizes = [1, 256], strides = [1, 1]} : vector<9x256xf32> to vector<1x256xf32>
    %75 = vector.broadcast %74 : vector<1x256xf32> to vector<8x256xf32>
    %76 = arith.mulf %73, %75 : vector<8x256xf32>
    %c1_i32_19 = arith.constant 1 : i32
    %77 = tpu.dynamic_rotate %63 by %c1_i32_19 dim 1 : vector<8x256xf32>, i32 -> vector<8x256xf32>
    %78 = vector.extract_strided_slice %2 {offsets = [3, 0], sizes = [1, 256], strides = [1, 1]} : vector<9x256xf32> to vector<1x256xf32>
    %79 = vector.broadcast %78 : vector<1x256xf32> to vector<8x256xf32>
    %80 = arith.mulf %77, %79 : vector<8x256xf32>
    %c255_i32_20 = arith.constant 255 : i32
    %81 = tpu.dynamic_rotate %63 by %c255_i32_20 dim 1 : vector<8x256xf32>, i32 -> vector<8x256xf32>
    %82 = vector.extract_strided_slice %2 {offsets = [5, 0], sizes = [1, 256], strides = [1, 1]} : vector<9x256xf32> to vector<1x256xf32>
    %83 = vector.broadcast %82 : vector<1x256xf32> to vector<8x256xf32>
    %84 = arith.mulf %81, %83 : vector<8x256xf32>
    %c241_i32_21 = arith.constant 241 : i32
    %85 = tpu.dynamic_rotate %63 by %c241_i32_21 dim 1 : vector<8x256xf32>, i32 -> vector<8x256xf32>
    %86 = vector.extract_strided_slice %2 {offsets = [6, 0], sizes = [1, 256], strides = [1, 1]} : vector<9x256xf32> to vector<1x256xf32>
    %87 = vector.broadcast %86 : vector<1x256xf32> to vector<8x256xf32>
    %88 = arith.mulf %85, %87 : vector<8x256xf32>
    %c240_i32_22 = arith.constant 240 : i32
    %89 = tpu.dynamic_rotate %63 by %c240_i32_22 dim 1 : vector<8x256xf32>, i32 -> vector<8x256xf32>
    %90 = vector.extract_strided_slice %2 {offsets = [7, 0], sizes = [1, 256], strides = [1, 1]} : vector<9x256xf32> to vector<1x256xf32>
    %91 = vector.broadcast %90 : vector<1x256xf32> to vector<8x256xf32>
    %92 = arith.mulf %89, %91 : vector<8x256xf32>
    %c239_i32_23 = arith.constant 239 : i32
    %93 = tpu.dynamic_rotate %63 by %c239_i32_23 dim 1 : vector<8x256xf32>, i32 -> vector<8x256xf32>
    %94 = vector.extract_strided_slice %2 {offsets = [8, 0], sizes = [1, 256], strides = [1, 1]} : vector<9x256xf32> to vector<1x256xf32>
    %95 = vector.broadcast %94 : vector<1x256xf32> to vector<8x256xf32>
    %96 = arith.mulf %93, %95 : vector<8x256xf32>
    %97 = tpu.concatenate %68, %72, %76, %80, %63, %84, %88, %92, %96 in 0 : vector<8x256xf32>, vector<8x256xf32>, vector<8x256xf32>, vector<8x256xf32>, vector<8x256xf32>, vector<8x256xf32>, vector<8x256xf32>, vector<8x256xf32>, vector<8x256xf32> -> vector<72x256xf32>
    %98 = arith.truncf %97 : vector<72x256xf32> to vector<72x256xbf16>
    %cst_24 = arith.constant dense<0.000000e+00> : vector<8x256xf32>
    %99 = tpu.matmul %64, %98, %cst_24 {dimension_numbers = #tpu.dot_dimension_numbers<[1], [0], [0], [1], [0, 0, 1, 1], [], []>} : vector<8x72xbf16>, vector<72x256xbf16>, vector<8x256xf32> -> vector<8x256xf32>
    %cst_25 = arith.constant dense<0.000000e+00> : vector<8xf32>
    %100 = vector.multi_reduction <add>, %99, %cst_25 [1] : vector<8x256xf32> to vector<8xf32>
    %101 = vector.shape_cast %100 : vector<8xf32> to vector<8x1xf32>
    %cst_26 = arith.constant 3.906250e-03 : f32
    %102 = vector.broadcast %cst_26 : f32 to vector<8x1xf32>
    %103 = arith.mulf %101, %102 : vector<8x1xf32>
    %104 = arith.mulf %99, %99 : vector<8x256xf32>
    %cst_27 = arith.constant dense<0.000000e+00> : vector<8xf32>
    %105 = vector.multi_reduction <add>, %104, %cst_27 [1] : vector<8x256xf32> to vector<8xf32>
    %106 = vector.shape_cast %105 : vector<8xf32> to vector<8x1xf32>
    %cst_28 = arith.constant 3.906250e-03 : f32
    %107 = vector.broadcast %cst_28 : f32 to vector<8x1xf32>
    %108 = arith.mulf %106, %107 : vector<8x1xf32>
    %109 = arith.mulf %103, %103 : vector<8x1xf32>
    %110 = arith.subf %108, %109 : vector<8x1xf32>
    %cst_29 = arith.constant 0.000000e+00 : f32
    %111 = vector.broadcast %cst_29 : f32 to vector<8x1xf32>
    %112 = arith.maximumf %110, %111 : vector<8x1xf32>
    %113 = vector.broadcast %103 : vector<8x1xf32> to vector<8x256xf32>
    %114 = arith.subf %99, %113 : vector<8x256xf32>
    %cst_30 = arith.constant 9.99999974E-6 : f32
    %115 = vector.broadcast %cst_30 : f32 to vector<8x1xf32>
    %116 = arith.addf %112, %115 : vector<8x1xf32>
    %117 = math.rsqrt %116 : vector<8x1xf32>
    %118 = vector.broadcast %117 : vector<8x1xf32> to vector<8x256xf32>
    %119 = arith.mulf %114, %118 : vector<8x256xf32>
    %cst_31 = arith.constant 0.000000e+00 : f32
    %120 = vector.broadcast %cst_31 : f32 to vector<8x256xf32>
    %121 = arith.cmpf oge, %119, %120 : vector<8x256xf32>
    %cst_32 = arith.constant 0.00999999977 : f32
    %122 = vector.broadcast %cst_32 : f32 to vector<8x256xf32>
    %123 = arith.mulf %122, %119 : vector<8x256xf32>
    %124 = arith.select %121, %119, %123 : vector<8x256xi1>, vector<8x256xf32>
    %125 = arith.addf %1, %124 : vector<8x256xf32>
    %c0_33 = arith.constant 0 : index
    %c0_34 = arith.constant 0 : index
    %c0_35 = arith.constant 0 : index
    %126 = vector.load %arg5[%c0_33, %c0_34, %c0_35] : memref<1x8x256xf32, #tpu.memory_space<vmem>>, vector<1x8x256xf32>
    %127 = vector.shape_cast %126 : vector<1x8x256xf32> to vector<8x256xf32>
    %128 = vector.shape_cast %125 : vector<8x256xf32> to vector<1x8x256xf32>
    tpu.vector_store %arg5[%c0_33, %c0_34, %c0_35], %128 {strides = array<i32>} : memref<1x8x256xf32, #tpu.memory_space<vmem>>, vector<1x8x256xf32>,
    return
  }
  func.func @transform_0(%arg0: i32) -> (i32, i32, i32) {
    %c0_i32 = arith.constant 0 : i32
    %c0_i32_0 = arith.constant 0 : i32
    %c0_i32_1 = arith.constant 0 : i32
    return %arg0, %c0_i32, %c0_i32_0 : i32, i32, i32
  }
  func.func @transform_1(%arg0: i32) -> (i32, i32) {
    %c0_i32 = arith.constant 0 : i32
    %c0_i32_0 = arith.constant 0 : i32
    %c0_i32_1 = arith.constant 0 : i32
    return %c0_i32, %c0_i32_0 : i32, i32
  }
  func.func @transform_2(%arg0: i32) -> (i32, i32) {
    %c0_i32 = arith.constant 0 : i32
    %c0_i32_0 = arith.constant 0 : i32
    %c0_i32_1 = arith.constant 0 : i32
    return %c0_i32, %c0_i32_0 : i32, i32
  }
  func.func @transform_3(%arg0: i32) -> (i32, i32) {
    %c0_i32 = arith.constant 0 : i32
    %c0_i32_0 = arith.constant 0 : i32
    %c0_i32_1 = arith.constant 0 : i32
    return %c0_i32, %c0_i32_0 : i32, i32
  }
  func.func @transform_4(%arg0: i32) -> (i32, i32, i32) {
    %c0_i32 = arith.constant 0 : i32
    %c0_i32_0 = arith.constant 0 : i32
    %c0_i32_1 = arith.constant 0 : i32
    return %arg0, %c0_i32, %c0_i32_0 : i32, i32, i32
  }
}

</mosaic_0001>

<llo_original>
// kernel: resblock_forward.1
$region0: #{resblock_forward.1}
  #allocation0 [shape = 'u32[]', space=smem, size = 0x4, offset = 0x4, fixed_abs, tag = 'smem constant byte address 0x4 - core index']
  #allocation1 [shape = 'u32[72,128]{1,0:T(1,128)}', space=vmem, size = 0x9000, scoped, tag = 'internal scratch']
  %s0 = inlined_call_operand.vmem [shape: f32[2,8,256], index: 0, kind: input, shape index: {}]
  %s1 = inlined_call_operand.vmem [shape: bf16[8,72], index: 1, kind: input, shape index: {}]
  %s2 = inlined_call_operand.vmem [shape: bf16[8,72], index: 2, kind: input, shape index: {}]
  %s3 = inlined_call_operand.vmem [shape: f32[9,256], index: 3, kind: input, shape index: {}]
  %s4 = inlined_call_operand.vmem [shape: f32[2,8,256], index: 4, kind: output, shape index: {}]
  %s5 = sld [smem:[#allocation0]]
  $region49: #{resblock_forward.1} parent=0
    _
  %s7 = ssub.s32 1, %s5
  %s8 = scalar_select 0, %s7, %s5
  loop: start=0, step=1, limit=4
  $region2: #{resblock_forward.1} parent=0 // loop_pre_header
    _
  $region3: #{resblock_forward.1} parent=0 // loop_header
    %s10 = sphi 0, %s14
    %p11 = scmp.ge.s32.totalorder %s10, 4
    %s20 = sphi 0, %s22
    %s23 = sphi 0, %s20
    %s24 = sphi 0, %s23
    %s40 = sphi 0, %s24
    %s44 = sphi 0, %s44
    %s46 = sphi 0, %s44
    %s47 = sphi 0, %s46
    %s61 = sphi 0, %s47
    %s65 = sphi 0, %s65
    %s67 = sphi 0, %s65
    %s68 = sphi 0, %s67
    %s82 = sphi 0, %s68
    %s86 = sphi 0, %s86
    %s88 = sphi 0, %s86
    %s89 = sphi 0, %s88
    %s103 = sphi 0, %s89
    %s109 = sphi 0, %s111
    %s112 = sphi 0, %s109
    %s113 = sphi 0, %s112
    %s129 = sphi 0, %s113
  $region4: #{resblock_forward.1} parent=0 // loop_header_branch
    %13 = sbr.rel (%p11) target = $region8
  $region5: #{resblock_forward.1} parent=0 // loop_body
    %s15 = ssub.s32 %s10, 1
    %s16 = ssub.s32 %s10, 2
    %s17 = sadd.s32 %s10, 1
    %s18 = ssub.s32 %s10, %s17
    %p19 = scmp.eq.s32.totalorder %s18, 0
    %s21 = sadd.s32 %s20, 1
    %s22 = scalar_select %p19, %s20, %s21
    %p25 = pneg %p19
    %p26 = scmp.eq.s32.totalorder %s10, 1
    %p27 = por %p25, %p26
    %p28 = scmp.ne.s32.totalorder %s20, %s23
    %p29 = scmp.eq.s32.totalorder %s10, 0
    %p30 = por %p28, %p29
    %p31 = scmp.ne.s32.totalorder %s20, %s23
    %p32 = scmp.eq.s32.totalorder %s15, 1
    %p33 = por %p31, %p32
    %p34 = scmp.ne.s32.totalorder %s23, %s24
    %p35 = scmp.eq.s32.totalorder %s15, 0
    %p36 = por %p34, %p35
    %p37 = scmp.ne.s32.totalorder %s23, %s24
    %p38 = scmp.eq.s32.totalorder %s16, 1
    %p39 = por %p37, %p38
    %p41 = scmp.ne.s32.totalorder %s24, %s40
    %p42 = scmp.eq.s32.totalorder %s16, 0
    %p43 = por %p41, %p42
    %s45 = sadd.s32 %s44, 1
    %p48 = scmp.eq.s32.totalorder %s10, 1
    %p49 = scmp.ne.s32.totalorder %s44, %s46
    %p50 = scmp.eq.s32.totalorder %s10, 0
    %p51 = por %p49, %p50
    %p52 = scmp.ne.s32.totalorder %s44, %s46
    %p53 = scmp.eq.s32.totalorder %s15, 1
    %p54 = por %p52, %p53
    %p55 = scmp.ne.s32.totalorder %s46, %s47
    %p56 = scmp.eq.s32.totalorder %s15, 0
    %p57 = por %p55, %p56
    %p58 = scmp.ne.s32.totalorder %s46, %s47
    %p59 = scmp.eq.s32.totalorder %s16, 1
    %p60 = por %p58, %p59
    %p62 = scmp.ne.s32.totalorder %s47, %s61
    %p63 = scmp.eq.s32.totalorder %s16, 0
    %p64 = por %p62, %p63
    %s66 = sadd.s32 %s65, 1
    %p69 = scmp.eq.s32.totalorder %s10, 1
    %p70 = scmp.ne.s32.totalorder %s65, %s67
    %p71 = scmp.eq.s32.totalorder %s10, 0
    %p72 = por %p70, %p71
    %p73 = scmp.ne.s32.totalorder %s65, %s67
    %p74 = scmp.eq.s32.totalorder %s15, 1
    %p75 = por %p73, %p74
    %p76 = scmp.ne.s32.totalorder %s67, %s68
    %p77 = scmp.eq.s32.totalorder %s15, 0
    %p78 = por %p76, %p77
    %p79 = scmp.ne.s32.totalorder %s67, %s68
    %p80 = scmp.eq.s32.totalorder %s16, 1
    %p81 = por %p79, %p80
    %p83 = scmp.ne.s32.totalorder %s68, %s82
    %p84 = scmp.eq.s32.totalorder %s16, 0
    %p85 = por %p83, %p84
    %s87 = sadd.s32 %s86, 1
    %p90 = scmp.eq.s32.totalorder %s10, 1
    %p91 = scmp.ne.s32.totalorder %s86, %s88
    %p92 = scmp.eq.s32.totalorder %s10, 0
    %p93 = por %p91, %p92
    %p94 = scmp.ne.s32.totalorder %s86, %s88
    %p95 = scmp.eq.s32.totalorder %s15, 1
    %p96 = por %p94, %p95
    %p97 = scmp.ne.s32.totalorder %s88, %s89
    %p98 = scmp.eq.s32.totalorder %s15, 0
    %p99 = por %p97, %p98
    %p100 = scmp.ne.s32.totalorder %s88, %s89
    %p101 = scmp.eq.s32.totalorder %s16, 1
    %p102 = por %p100, %p101
    %p104 = scmp.ne.s32.totalorder %s89, %s103
    %p105 = scmp.eq.s32.totalorder %s16, 0
    %p106 = por %p104, %p105
    %s107 = ssub.s32 %s10, %s17
    %p108 = scmp.eq.s32.totalorder %s107, 0
    %s110 = sadd.s32 %s109, 1
    %s111 = scalar_select %p108, %s109, %s110
    %p114 = pneg %p108
    %p115 = scmp.eq.s32.totalorder %s10, 1
    %p116 = por %p114, %p115
    %p117 = scmp.ne.s32.totalorder %s109, %s112
    %p118 = scmp.eq.s32.totalorder %s10, 0
    %p119 = por %p117, %p118
    %p120 = scmp.ne.s32.totalorder %s109, %s112
    %p121 = scmp.eq.s32.totalorder %s15, 1
    %p122 = por %p120, %p121
    %p123 = scmp.ne.s32.totalorder %s112, %s113
    %p124 = scmp.eq.s32.totalorder %s15, 0
    %p125 = por %p123, %p124
    %p126 = scmp.ne.s32.totalorder %s112, %s113
    %p127 = scmp.eq.s32.totalorder %s16, 1
    %p128 = por %p126, %p127
    %p130 = scmp.ne.s32.totalorder %s113, %s129
    %p131 = scmp.eq.s32.totalorder %s16, 0
    %p132 = por %p130, %p131
    %p133 = scmp.le.s32.totalorder 1, %s10
    %p134 = scmp.lt.s32.totalorder %s10, 3
    %p135 = pnand %p133, %p134
    %p136 = pneg %p135
    // Predicated region
    $region9: #{resblock_forward.1} parent=5 // pred_check
      _
    $region10: #{resblock_forward.1} parent=5 // pred_check_branch
      %138 = sbr.rel (%p135) target = $region12
    $region11: #{resblock_forward.1} parent=5 // pred_region
      %s139 = ssub.s32 %s10, 1
      // Predicated region
      $region13: #{resblock_forward.1} parent=11 // pred_check
        %p140 = pneg %p57
      $region14: #{resblock_forward.1} parent=11 // pred_check_branch
        %142 = sbr.rel (%p140) target = $region16
      $region15: #{resblock_forward.1} parent=11 // pred_region
        _
      $region16: #{resblock_forward.1} parent=11 // pred_fallthru
        _
      // Predicated region
      $region17: #{resblock_forward.1} parent=11 // pred_check
        %p143 = pneg %p78
      $region18: #{resblock_forward.1} parent=11 // pred_check_branch
        %145 = sbr.rel (%p143) target = $region20
      $region19: #{resblock_forward.1} parent=11 // pred_region
        _
      $region20: #{resblock_forward.1} parent=11 // pred_fallthru
        _
      // Predicated region
      $region21: #{resblock_forward.1} parent=11 // pred_check
        %p146 = pneg %p99
      $region22: #{resblock_forward.1} parent=11 // pred_check_branch
        %148 = sbr.rel (%p146) target = $region24
      $region23: #{resblock_forward.1} parent=11 // pred_region
        _
      $region24: #{resblock_forward.1} parent=11 // pred_fallthru
        _
    $region12: #{resblock_forward.1} parent=5 // pred_fallthru
      _
    %p149 = scmp.lt.s32.totalorder %s10, 2
    // Predicated region
    $region25: #{resblock_forward.1} parent=5 // pred_check
      %p150 = pneg %p149
    $region26: #{resblock_forward.1} parent=5 // pred_check_branch
      %152 = sbr.rel (%p150) target = $region28
    $region27: #{resblock_forward.1} parent=5 // pred_region
      // Predicated region
      $region29: #{resblock_forward.1} parent=27 // pred_check
        %p153 = pneg %p30
      $region30: #{resblock_forward.1} parent=27 // pred_check_branch
        %155 = sbr.rel (%p153) target = $region32
      $region31: #{resblock_forward.1} parent=27 // pred_region
        %p156 = scmp.lt.s32.totalorder %s10, 1
        %s157 = scalar_select %p156, %s10, 1
        %s158 = smul.addr %s157, 2
        %s159 = smul.addr %s158, 8
        %s160 = scalar_lea.vmem %s0, %s159
      $region32: #{resblock_forward.1} parent=27 // pred_fallthru
        _
    $region28: #{resblock_forward.1} parent=5 // pred_fallthru
      _
    %p161 = scmp.le.s32.totalorder 1, %s10
    %p162 = scmp.lt.s32.totalorder %s10, 3
    %p163 = pnand %p161, %p162
    %p164 = pneg %p163
    // Predicated region
    $region33: #{resblock_forward.1} parent=5 // pred_check
      _
    $region34: #{resblock_forward.1} parent=5 // pred_check_branch
      %166 = sbr.rel (%p163) target = $region36
    $region35: #{resblock_forward.1} parent=5 // pred_region
      %s167 = ssub.s32 %s10, 1
      %p168 = scmp.lt.s32.totalorder %s15, 1
      %s169 = scalar_select %p168, %s15, 1
      %s170 = smul.addr %s169, 2
      %s171 = smul.addr %s170, 8
      %s172 = scalar_lea.vmem %s0, %s171
      %p173 = pneg %p36
      %p174 = pneg %p33
      %p175 = pneg %p57
      %p176 = pneg %p54
      %p177 = pneg %p78
      %p178 = pneg %p75
      %p179 = pneg %p99
      %p180 = pneg %p96
      %p181 = pneg %p125
      %p182 = pneg %p122
      %p183 = scmp.lt.s32.totalorder %s15, 1
      %s184 = scalar_select %p183, %s15, 1
      %s185 = smul.addr %s184, 2
      %s186 = smul.addr %s185, 8
      %s187 = scalar_lea.vmem %s4, %s186
      %p188 = scmp.lt.s32.totalorder %s15, 1
      %s189 = scalar_select %p188, %s15, 1
      %s190 = smul.addr %s189, 2
      %s191 = smul.addr %s190, 8
      %s192 = scalar_lea.vmem %s0, %s191
      %p193 = scmp.lt.s32.totalorder %s15, 1
      %s194 = scalar_select %p193, %s15, 1
      %s195 = smul.addr %s194, 2
      %s196 = smul.addr %s195, 8
      %s197 = scalar_lea.vmem %s4, %s196
      %v199 = vld [vmem:[%s192] sm:$0xff]
      %v200 = vld [vmem:[%s192 + $0x8] sm:$0xff]
      %v201 = vld [vmem:[%s3] sm:$0xff]
      %v202 = vld [vmem:[%s3 + $0x8] sm:$0xff]
      %v203 = vld [vmem:[%s3 + $0x10] sm:$0x1]
      %v204 = vld [vmem:[%s3 + $0x18] sm:$0x1]
      %v205 = vld [vmem:[%s1] sm:$0xf]
      %206 = vrot.lane.b32.xlu0 %v199, 17
      %v207 = vpop.permute.xlu0 %206
      %208 = vrot.lane.b32.xlu0 %v200, 17
      %v209 = vpop.permute.xlu0 %208
      %v210 = vlaneseq
      %v211 = vand.u32 %v210, 127
      %vm212 = vcmp.lt.s32.totalorder %v211, 17
      %v213 = vsel %vm212, %v207, %v209
      %v214 = vsel %vm212, %v209, %v207
      %v215 = vperm.slane %v201, 0
      %v216 = vperm.slane %v202, 0
      %v217 = vmul.f32 %v214, %v215
      %v218 = vmul.f32 %v213, %v216
      %219 = vrot.lane.b32.xlu0 %v199, 16
      %v220 = vpop.permute.xlu0 %219
      %221 = vrot.lane.b32.xlu0 %v200, 16
      %v222 = vpop.permute.xlu0 %221
      %vm223 = vcmp.lt.s32.totalorder %v211, 16
      %v224 = vsel %vm223, %v220, %v222
      %v225 = vsel %vm223, %v222, %v220
      %v226 = vperm.slane %v201, 1
      %v227 = vperm.slane %v202, 1
      %v228 = vmul.f32 %v225, %v226
      %v229 = vmul.f32 %v224, %v227
      %230 = vrot.lane.b32.xlu0 %v199, 15
      %v231 = vpop.permute.xlu0 %230
      %232 = vrot.lane.b32.xlu0 %v200, 15
      %v233 = vpop.permute.xlu0 %232
      %vm234 = vcmp.lt.s32.totalorder %v211, 15
      %v235 = vsel %vm234, %v231, %v233
      %v236 = vsel %vm234, %v233, %v231
      %v237 = vperm.slane %v201, 2
      %v238 = vperm.slane %v202, 2
      %v239 = vmul.f32 %v236, %v237
      %v240 = vmul.f32 %v235, %v238
      %241 = vrot.lane.b32.xlu0 %v199, 1
      %v242 = vpop.permute.xlu0 %241
      %243 = vrot.lane.b32.xlu0 %v200, 1
      %v244 = vpop.permute.xlu0 %243
      %vm245 = vcmp.lt.s32.totalorder %v211, 1
      %v246 = vsel %vm245, %v242, %v244
      %v247 = vsel %vm245, %v244, %v242
      %v248 = vperm.slane %v201, 3
      %v249 = vperm.slane %v202, 3
      %v250 = vmul.f32 %v247, %v248
      %v251 = vmul.f32 %v246, %v249
      %252 = vrot.lane.b32.xlu0 %v199, 127
      %v253 = vpop.permute.xlu0 %252
      %254 = vrot.lane.b32.xlu0 %v200, 127
      %v255 = vpop.permute.xlu0 %254
      %vm256 = vcmp.lt.s32.totalorder %v211, 127
      %v257 = vsel %vm256, %v253, %v255
      %v258 = vsel %vm256, %v255, %v253
      %v259 = vperm.slane %v201, 5
      %v260 = vperm.slane %v202, 5
      %v261 = vmul.f32 %v257, %v259
      %v262 = vmul.f32 %v258, %v260
      %263 = vrot.lane.b32.xlu0 %v199, 113
      %v264 = vpop.permute.xlu0 %263
      %265 = vrot.lane.b32.xlu0 %v200, 113
      %v266 = vpop.permute.xlu0 %265
      %vm267 = vcmp.lt.s32.totalorder %v211, 113
      %v268 = vsel %vm267, %v264, %v266
      %v269 = vsel %vm267, %v266, %v264
      %v270 = vperm.slane %v201, 6
      %v271 = vperm.slane %v202, 6
      %v272 = vmul.f32 %v268, %v270
      %v273 = vmul.f32 %v269, %v271
      %274 = vrot.lane.b32.xlu0 %v199, 112
      %v275 = vpop.permute.xlu0 %274
      %276 = vrot.lane.b32.xlu0 %v200, 112
      %v277 = vpop.permute.xlu0 %276
      %vm278 = vcmp.lt.s32.totalorder %v211, 112
      %v279 = vsel %vm278, %v275, %v277
      %v280 = vsel %vm278, %v277, %v275
      %v281 = vperm.slane %v201, 7
      %v282 = vperm.slane %v202, 7
      %v283 = vmul.f32 %v279, %v281
      %v284 = vmul.f32 %v280, %v282
      %285 = vrot.lane.b32.xlu0 %v199, 111
      %v286 = vpop.permute.xlu0 %285
      %287 = vrot.lane.b32.xlu0 %v200, 111
      %v288 = vpop.permute.xlu0 %287
      %vm289 = vcmp.lt.s32.totalorder %v211, 111
      %v290 = vsel %vm289, %v286, %v288
      %v291 = vsel %vm289, %v288, %v286
      %v292 = vperm.slane %v203, 0
      %v293 = vperm.slane %v204, 0
      %v294 = vmul.f32 %v290, %v292
      %v295 = vmul.f32 %v291, %v293
      %v296 = vpack.c.bf16 %v228, %v217
      %v297 = vpack.c.bf16 %v229, %v218
      %v298 = vpack.c.bf16 %v250, %v239
      %v299 = vpack.c.bf16 %v251, %v240
      %v300 = vpack.c.bf16 %v261, %v199
      %v301 = vpack.c.bf16 %v262, %v200
      %v302 = vpack.c.bf16 %v283, %v272
      %v303 = vpack.c.bf16 %v284, %v273
      %v304 = vpack.c.bf16 %v294, %v294
      %v305 = vpack.c.bf16 %v295, %v295
      %vm306 = vcmask 588800
      %v308 = vsel %vm306, %v205, 0
      %vm310 = vcmask 1043456
      %v312 = vsel %vm310, %v304, 0
      %v315 = vsel %vm310, %v305, 0
      %317 = vmatpush.bf16.msra.mxu0 0
      %318 = vmatpush.bf16.msra.mxu0 0
      %319 = vmatpush.bf16.msra.mxu0 0
      %320 = vmatpush.bf16.msra.mxu0 %v312
      %321 = vmatpush.bf16.msra.mxu0 %v302
      %322 = vmatpush.bf16.msra.mxu0 %v300
      %323 = vmatpush.bf16.msra.mxu0 %v298
      %324 = vmatpush.bf16.msra.mxu0 %v296
      %325 = vmatmul.bf16.gmra.mxu0 %v308
      %v326 = vpop.f32.mrf.mxu0
      %v327 = vadd.f32 0.0, %v326
      %v328 = vpop.f32.mrf.mxu0
      %329 = vdwg.mxu0
      %330 = vmatpush.bf16.msra.mxu0 0
      %331 = vmatpush.bf16.msra.mxu0 0
      %332 = vmatpush.bf16.msra.mxu0 0
      %333 = vmatpush.bf16.msra.mxu0 %v315
      %334 = vmatpush.bf16.msra.mxu0 %v303
      %335 = vmatpush.bf16.msra.mxu0 %v301
      %336 = vmatpush.bf16.msra.mxu0 %v299
      %337 = vmatpush.bf16.msra.mxu0 %v297
      %338 = vmatmul.bf16.gmra.mxu0 %v308
      %v339 = vpop.f32.mrf.mxu0
      %v340 = vadd.f32 0.0, %v339
      %v341 = vpop.f32.mrf.mxu0
      %342 = vdwg.mxu0
      %v343 = vadd.f32 %v327, %v340
      %344 = vadd.xlane.f32.xlu0 %v343
      %v345 = vpop.xlane.xlu0 %344
      %v346 = vmul.f32 %v345, 0.00390625
      %v347 = vmul.f32 %v327, %v327
      %v348 = vmul.f32 %v340, %v340
      %v349 = vadd.f32 %v347, %v348
      %350 = vadd.xlane.f32.xlu0 %v349
      %v351 = vpop.xlane.xlu0 %350
      %v352 = vmul.f32 %v351, 0.00390625
      %v353 = vmul.f32 %v346, %v346
      %v354 = vsub.f32 %v352, %v353
      %v355 = vmax.f32 %v354, 0.0
      %v356 = vsub.f32 %v327, %v346
      %v357 = vsub.f32 %v340, %v346
      %v358 = vadd.f32 %v355, 1e-05
      %v359 = vrsqrt.pop %v358
      %v360 = vmul.f32 %v359, %v358
      %v361 = vmul.f32 %v360, %v359
      %v362 = vmul.f32 0.5, %v361
      %v363 = vsub.f32 1.5, %v362
      %v364 = vmul.f32 %v359, %v363
      %vm365 = vweird.f32 %v358
      %vm366 = vweird.f32 %v359
      %vm367 = vmor %vm365, %vm366
      %v368 = vsel %vm367, %v359, %v364
      %v369 = vmul.f32 %v356, %v368
      %v370 = vmul.f32 %v357, %v368
      %vm371 = vcmp.ge.f32.partialorder %v369, 0.0
      %vm372 = vcmp.ge.f32.partialorder %v370, 0.0
      %v373 = vmul.f32 %v369, 0.01
      %v374 = vmul.f32 %v370, 0.01
      %v375 = vsel %vm371, %v369, %v373
      %v376 = vsel %vm372, %v370, %v374
      %v377 = vld [vmem:[%s2] sm:$0xf]
      %378 = vrot.lane.b32.xlu0 %v375, 17
      %v379 = vpop.permute.xlu0 %378
      %380 = vrot.lane.b32.xlu0 %v376, 17
      %v381 = vpop.permute.xlu0 %380
      %v382 = vsel %vm212, %v379, %v381
      %v383 = vsel %vm212, %v381, %v379
      %v384 = vmul.f32 %v383, %v215
      %v385 = vmul.f32 %v382, %v216
      %386 = vrot.lane.b32.xlu0 %v375, 16
      %v387 = vpop.permute.xlu0 %386
      %388 = vrot.lane.b32.xlu0 %v376, 16
      %v389 = vpop.permute.xlu0 %388
      %v390 = vsel %vm223, %v387, %v389
      %v391 = vsel %vm223, %v389, %v387
      %v392 = vmul.f32 %v391, %v226
      %v393 = vmul.f32 %v390, %v227
      %394 = vrot.lane.b32.xlu0 %v375, 15
      %v395 = vpop.permute.xlu0 %394
      %396 = vrot.lane.b32.xlu0 %v376, 15
      %v397 = vpop.permute.xlu0 %396
      %v398 = vsel %vm234, %v395, %v397
      %v399 = vsel %vm234, %v397, %v395
      %v400 = vmul.f32 %v399, %v237
      %v401 = vmul.f32 %v398, %v238
      %402 = vrot.lane.b32.xlu0 %v375, 1
      %v403 = vpop.permute.xlu0 %402
      %404 = vrot.lane.b32.xlu0 %v376, 1
      %v405 = vpop.permute.xlu0 %404
      %v406 = vsel %vm245, %v403, %v405
      %v407 = vsel %vm245, %v405, %v403
      %v408 = vmul.f32 %v407, %v248
      %v409 = vmul.f32 %v406, %v249
      %410 = vrot.lane.b32.xlu0 %v375, 127
      %v411 = vpop.permute.xlu0 %410
      %412 = vrot.lane.b32.xlu0 %v376, 127
      %v413 = vpop.permute.xlu0 %412
      %v414 = vsel %vm256, %v411, %v413
      %v415 = vsel %vm256, %v413, %v411
      %v416 = vmul.f32 %v414, %v259
      %v417 = vmul.f32 %v415, %v260
      %418 = vrot.lane.b32.xlu0 %v375, 113
      %v419 = vpop.permute.xlu0 %418
      %420 = vrot.lane.b32.xlu0 %v376, 113
      %v421 = vpop.permute.xlu0 %420
      %v422 = vsel %vm267, %v419, %v421
      %v423 = vsel %vm267, %v421, %v419
      %v424 = vmul.f32 %v422, %v270
      %v425 = vmul.f32 %v423, %v271
      %426 = vrot.lane.b32.xlu0 %v375, 112
      %v427 = vpop.permute.xlu0 %426
      %428 = vrot.lane.b32.xlu0 %v376, 112
      %v429 = vpop.permute.xlu0 %428
      %v430 = vsel %vm278, %v427, %v429
      %v431 = vsel %vm278, %v429, %v427
      %v432 = vmul.f32 %v430, %v281
      %v433 = vmul.f32 %v431, %v282
      %434 = vrot.lane.b32.xlu0 %v375, 111
      %v435 = vpop.permute.xlu0 %434
      %436 = vrot.lane.b32.xlu0 %v376, 111
      %v437 = vpop.permute.xlu0 %436
      %v438 = vsel %vm289, %v435, %v437
      %v439 = vsel %vm289, %v437, %v435
      %v440 = vmul.f32 %v438, %v292
      %v441 = vmul.f32 %v439, %v293
      %v442 = vpack.c.bf16 %v392, %v384
      %v443 = vpack.c.bf16 %v393, %v385
      %v444 = vpack.c.bf16 %v408, %v400
      %v445 = vpack.c.bf16 %v409, %v401
      %v446 = vpack.c.bf16 %v416, %v375
      %v447 = vpack.c.bf16 %v417, %v376
      %v448 = vpack.c.bf16 %v432, %v424
      %v449 = vpack.c.bf16 %v433, %v425
      %v450 = vpack.c.bf16 %v440, %v440
      %v451 = vpack.c.bf16 %v441, %v441
      %v453 = vsel %vm306, %v377, 0
      %v456 = vsel %vm310, %v450, 0
      %v459 = vsel %vm310, %v451, 0
      %461 = vmatpush.bf16.msra.mxu0 0
      %462 = vmatpush.bf16.msra.mxu0 0
      %463 = vmatpush.bf16.msra.mxu0 0
      %464 = vmatpush.bf16.msra.mxu0 %v456
      %465 = vmatpush.bf16.msra.mxu0 %v448
      %466 = vmatpush.bf16.msra.mxu0 %v446
      %467 = vmatpush.bf16.msra.mxu0 %v444
      %468 = vmatpush.bf16.msra.mxu0 %v442
      %469 = vmatmul.bf16.gmra.mxu0 %v453
      %v470 = vpop.f32.mrf.mxu0
      %v471 = vadd.f32 0.0, %v470
      %v472 = vpop.f32.mrf.mxu0
      %473 = vdwg.mxu0
      %474 = vmatpush.bf16.msra.mxu0 0
      %475 = vmatpush.bf16.msra.mxu0 0
      %476 = vmatpush.bf16.msra.mxu0 0
      %477 = vmatpush.bf16.msra.mxu0 %v459
      %478 = vmatpush.bf16.msra.mxu0 %v449
      %479 = vmatpush.bf16.msra.mxu0 %v447
      %480 = vmatpush.bf16.msra.mxu0 %v445
      %481 = vmatpush.bf16.msra.mxu0 %v443
      %482 = vmatmul.bf16.gmra.mxu0 %v453
      %v483 = vpop.f32.mrf.mxu0
      %v484 = vadd.f32 0.0, %v483
      %v485 = vpop.f32.mrf.mxu0
      %486 = vdwg.mxu0
      %v487 = vadd.f32 %v471, %v484
      %488 = vadd.xlane.f32.xlu0 %v487
      %v489 = vpop.xlane.xlu0 %488
      %v490 = vmul.f32 %v489, 0.00390625
      %v491 = vmul.f32 %v471, %v471
      %v492 = vmul.f32 %v484, %v484
      %v493 = vadd.f32 %v491, %v492
      %494 = vadd.xlane.f32.xlu0 %v493
      %v495 = vpop.xlane.xlu0 %494
      %v496 = vmul.f32 %v495, 0.00390625
      %v497 = vmul.f32 %v490, %v490
      %v498 = vsub.f32 %v496, %v497
      %v499 = vmax.f32 %v498, 0.0
      %v500 = vsub.f32 %v471, %v490
      %v501 = vsub.f32 %v484, %v490
      %v502 = vadd.f32 %v499, 1e-05
      %v503 = vrsqrt.pop %v502
      %v504 = vmul.f32 %v503, %v502
      %v505 = vmul.f32 %v504, %v503
      %v506 = vmul.f32 0.5, %v505
      %v507 = vsub.f32 1.5, %v506
      %v508 = vmul.f32 %v503, %v507
      %vm509 = vweird.f32 %v502
      %vm510 = vweird.f32 %v503
      %vm511 = vmor %vm509, %vm510
      %v512 = vsel %vm511, %v503, %v508
      %v513 = vmul.f32 %v500, %v512
      %v514 = vmul.f32 %v501, %v512
      %vm515 = vcmp.ge.f32.partialorder %v513, 0.0
      %vm516 = vcmp.ge.f32.partialorder %v514, 0.0
      %v517 = vmul.f32 %v513, 0.01
      %v518 = vmul.f32 %v514, 0.01
      %v519 = vsel %vm515, %v513, %v517
      %v520 = vsel %vm516, %v514, %v518
      %v521 = vadd.f32 %v199, %v519
      %v522 = vadd.f32 %v200, %v520
      %523 = vst [vmem:[%s197] sm:$0xff] %v521
      %524 = vst [vmem:[%s197 + $0x8] sm:$0xff] %v522
      %p525 = scmp.lt.s32.totalorder %s15, 1
      %s526 = scalar_select %p525, %s15, 1
      %s527 = smul.addr %s526, 2
      %s528 = smul.addr %s527, 8
      %s529 = scalar_lea.vmem %s4, %s528
      // Predicated region
      $region37: #{resblock_forward.1} parent=35 // pred_check
        %p530 = pneg %p122
      $region38: #{resblock_forward.1} parent=35 // pred_check_branch
        %532 = sbr.rel (%p530) target = $region40
      $region39: #{resblock_forward.1} parent=35 // pred_region
        _
      $region40: #{resblock_forward.1} parent=35 // pred_fallthru
        _
    $region36: #{resblock_forward.1} parent=5 // pred_fallthru
      _
    %p533 = scmp.le.s32.totalorder 2, %s10
    // Predicated region
    $region41: #{resblock_forward.1} parent=5 // pred_check
      %p534 = pneg %p533
    $region42: #{resblock_forward.1} parent=5 // pred_check_branch
      %536 = sbr.rel (%p534) target = $region44
    $region43: #{resblock_forward.1} parent=5 // pred_region
      %s537 = ssub.s32 %s10, 2
      // Predicated region
      $region45: #{resblock_forward.1} parent=43 // pred_check
        %p538 = pneg %p128
      $region46: #{resblock_forward.1} parent=43 // pred_check_branch
        %540 = sbr.rel (%p538) target = $region48
      $region47: #{resblock_forward.1} parent=43 // pred_region
        %p541 = scmp.lt.s32.totalorder %s16, 1
        %s542 = scalar_select %p541, %s16, 1
        %s543 = smul.addr %s542, 2
        %s544 = smul.addr %s543, 8
        %s545 = scalar_lea.vmem %s4, %s544
      $region48: #{resblock_forward.1} parent=43 // pred_fallthru
        _
    $region44: #{resblock_forward.1} parent=5 // pred_fallthru
      _
  $region6: #{resblock_forward.1} parent=0 // loop_footer
    %s14 = sadd.s32 1, %s10
  $region7: #{resblock_forward.1} parent=0 // loop_footer_branch
    %9 = sbr.rel target = $region3
  $region8: #{resblock_forward.1} parent=0 // loop_exit
    _

</llo_original>
